<compile_context>
chip_gen: v7x
topology: tpu7x:2x2x1
jax: 0.10.0
libtpu: 0.0.40
codegen_flags: <defaults>
</compile_context>

<pallas_src>
import functools

import jax
import jax.numpy as jnp
from jax.experimental import pallas as pl
from jax.experimental.pallas import tpu as pltpu


def _apply_gamma(base, gamma):
    """base**gamma with an integer-gamma fast path (pure VPU multiplies)."""
    if gamma == 0.0:
        return jnp.ones_like(base)
    if float(gamma).is_integer() and 0 < gamma <= 8:
        out = base
        for _ in range(int(gamma) - 1):
            out = out * base
        return out
    # Fractional gamma: pow(negative, frac) would be NaN -> clamp base at 0.
    return jnp.power(jnp.maximum(base, 0.0), gamma)


def _focal_loss_kernel(x_ref, t_ref, w_ref, out_ref, *, gamma):
    """One grid step: a (1, C, tile_hw) slab of log-probs -> one f32 partial sum.

    x_ref : (1, C, tile_hw) f32   log-probabilities (lanes = spatial positions)
    t_ref : (1, 1, tile_hw) i32   target class index per spatial position
    w_ref : (C, 1)          f32   per-class NLL weights
    out_ref: (1, 1, 1, 1)   f32   this block's partial loss sum
    """
    x = x_ref[0]                      # (C, tile_hw)
    t = t_ref[0]                      # (1, tile_hw)
    w = w_ref[...]                    # (C, 1)

    class_ids = jax.lax.broadcasted_iota(jnp.int32, x.shape, 0)   # (C, tile_hw)
    is_target = class_ids == t                                    # (C, tile_hw)

    # Fused per-class term: -x * (1 - exp(x))^gamma, masked to the target class,
    # then weighted per class.  Exactly one class survives per spatial position,
    # so summing over everything gives sum_pos[-w_t * x_t * (1 - exp(x_t))^gamma].
    focal = _apply_gamma(1.0 - jnp.exp(x), gamma)                 # (C, tile_hw)
    per_class = jnp.where(is_target, (-x) * focal, 0.0)           # (C, tile_hw)
    contrib = per_class * w                                       # (C, tile_hw)

    out_ref[...] = jnp.reshape(jnp.sum(contrib), (1, 1, 1, 1))


def _choose_tile_hw(hw, c, max_block_bytes):
    """Largest spatial tile that divides hw, is a multiple of 128 (or == hw),
    and keeps the f32 x-block under max_block_bytes."""
    cap = max(128, max_block_bytes // (c * 4))
    if hw <= cap:
        return hw                      # whole spatial extent per step
    t = (cap // 128) * 128
    while t >= 128:
        if hw % t == 0:
            return t
        t -= 128
    # TODO(synk): ragged H*W with no 128-multiple divisor is not tiled/masked;
    # fall back to whole-HW blocks (may exceed the VMEM budget for huge inputs).
    return hw


def focal_loss_multilabel(inp_nchw, target_nhw, weight, gamma,
                          *, max_block_bytes=2 << 20):
    """inp_nchw: [N, C, H, W] log-probs; target_nhw: [N, H, W] int; weight: [C]."""
    N, C, H, W = inp_nchw.shape
    HW = H * W
    M = N * HW

    # Free, contiguous reshapes only -- no transpose pass over HBM.
    x = inp_nchw.reshape(N, C, HW).astype(jnp.float32)
    t = target_nhw.reshape(N, 1, HW).astype(jnp.int32)
    # NOTE: targets kept int32; for very small C they could be packed to int8
    # to shave another ~15-20% of HBM traffic.
    w = weight.reshape(C, 1).astype(jnp.float32)

    tile_hw = _choose_tile_hw(HW, C, max_block_bytes)
    T = HW // tile_hw

    kernel = functools.partial(_focal_loss_kernel, gamma=float(gamma))

    partials = pl.pallas_call(
        kernel,
        out_shape=jax.ShapeDtypeStruct((N, T, 1, 1), jnp.float32),
        grid_spec=pltpu.PrefetchScalarGridSpec(
            num_scalar_prefetch=0,
            grid=(N, T),
            in_specs=[
                pl.BlockSpec((1, C, tile_hw), lambda n, j: (n, 0, j)),
                pl.BlockSpec((1, 1, tile_hw), lambda n, j: (n, 0, j)),
                pl.BlockSpec((C, 1), lambda n, j: (0, 0)),
            ],
            out_specs=pl.BlockSpec((1, 1, 1, 1), lambda n, j: (n, j, 0, 0)),
        ),
        compiler_params=pltpu.CompilerParams(
            dimension_semantics=("parallel", "parallel")),
    )(x, t, w)

    # Final reduction over the (tiny) per-block partials + mean, in plain JAX.
    return jnp.sum(partials) / jnp.float32(M)


def _reference(inp_nchw, target_nhw, weight, gamma):
    """Pure-JAX reference mirroring the PyTorch forward."""
    N, C, H, W = inp_nchw.shape
    onehot = jax.nn.one_hot(target_nhw, C, axis=1, dtype=inp_nchw.dtype)  # [N,C,H,W]
    logp_t = jnp.sum(inp_nchw * onehot, axis=1)                           # [N,H,W]
    w_t = jnp.sum(weight[None, :, None, None] * onehot, axis=1)           # [N,H,W]
    nll = -w_t * logp_t
    focal = jnp.sum((1.0 - jnp.exp(inp_nchw)) * onehot, axis=1) ** gamma
    return jnp.mean(nll * focal)


if __name__ == "__main__":
    key = jax.random.PRNGKey(0)
    k_logits, k_target = jax.random.split(key)

    N, C, H, W = 2, 4, 16, 16
    gamma = 2.0
    # deterministic per-class weights (module __init__ takes `weight` of shape [C])
    weight = 1.0 + 0.1 * jnp.arange(C, dtype=jnp.float32)

    logits = jax.random.normal(k_logits, (N, C, H, W), dtype=jnp.float32)
    # NLLLoss expects log-probabilities
    log_probs = jax.nn.log_softmax(logits, axis=1)
    target = jax.random.randint(k_target, (N, H, W), 0, C, dtype=jnp.int32)

    out = focal_loss_multilabel(log_probs, target, weight, gamma)
    out = jax.block_until_ready(out)

    ref = _reference(log_probs, target, weight, gamma)
    assert jnp.allclose(out, ref, rtol=1e-5, atol=1e-6), (out, ref)

    print("KERNEL_OK")
</pallas_src>

<mosaic_0001>
module attributes {stable_mosaic.version = 11 : i64} {
  func.func @_focal_loss_kernel(%arg0: i32, %arg1: i32, %arg2: memref<1x4x256xf32, #tpu.memory_space<vmem>>, %arg3: memref<1x1x256xi32, #tpu.memory_space<vmem>>, %arg4: memref<4x1xf32, #tpu.memory_space<vmem>>, %arg5: memref<1x1x1x1xf32, #tpu.memory_space<vmem>>) attributes {dimension_semantics = [#tpu.dimension_semantics<parallel>, #tpu.dimension_semantics<parallel>], iteration_bounds = array<i64: 2, 1>, scalar_prefetch = 0 : i64, scratch_operands = 0 : i64, tpu.core_type = #tpu.core_type<tc>, window_params = [{transform_indices = @transform_0, window_bounds = array<i64: 1, 4, 256>}, {transform_indices = @transform_1, window_bounds = array<i64: 1, 1, 256>}, {pipeline_mode = #tpu.pipeline_mode<synchronous>, transform_indices = @transform_2, window_bounds = array<i64: 4, 1>}, {transform_indices = @transform_3, window_bounds = array<i64: 1, 1, 1, 1>}]} {
    %c0 = arith.constant 0 : index
    %c0_0 = arith.constant 0 : index
    %c0_1 = arith.constant 0 : index
    %0 = vector.load %arg2[%c0, %c0_0, %c0_1] : memref<1x4x256xf32, #tpu.memory_space<vmem>>, vector<1x4x256xf32>
    %1 = vector.shape_cast %0 : vector<1x4x256xf32> to vector<4x256xf32>
    %c0_2 = arith.constant 0 : index
    %c0_3 = arith.constant 0 : index
    %c0_4 = arith.constant 0 : index
    %2 = vector.load %arg3[%c0_2, %c0_3, %c0_4] : memref<1x1x256xi32, #tpu.memory_space<vmem>>, vector<1x1x256xi32>
    %3 = vector.shape_cast %2 : vector<1x1x256xi32> to vector<1x256xi32>
    %c0_5 = arith.constant 0 : index
    %c0_6 = arith.constant 0 : index
    %4 = vector.load %arg4[%c0_5, %c0_6] : memref<4x1xf32, #tpu.memory_space<vmem>>, vector<4x1xf32>
    %5 = tpu.iota {dimensions = array<i32: 0>} : vector<4x256xi32>
    %6 = vector.broadcast %3 : vector<1x256xi32> to vector<4x256xi32>
    %7 = arith.cmpi eq, %5, %6 : vector<4x256xi32>
    %8 = math.exp %1 : vector<4x256xf32>
    %cst = arith.constant 1.000000e+00 : f32
    %9 = vector.broadcast %cst : f32 to vector<4x256xf32>
    %10 = arith.subf %9, %8 : vector<4x256xf32>
    %11 = arith.mulf %10, %10 : vector<4x256xf32>
    %cst_7 = arith.constant 0.000000e+00 : f32
    %12 = vector.broadcast %cst_7 : f32 to vector<4x256xf32>
    %13 = arith.subf %12, %1 : vector<4x256xf32>
    %14 = arith.mulf %13, %11 : vector<4x256xf32>
    %cst_8 = arith.constant 0.000000e+00 : f32
    %15 = vector.broadcast %cst_8 : f32 to vector<4x256xf32>
    %16 = arith.select %7, %14, %15 : vector<4x256xi1>, vector<4x256xf32>
    %17 = vector.broadcast %4 : vector<4x1xf32> to vector<4x256xf32>
    %18 = arith.mulf %16, %17 : vector<4x256xf32>
    %19 = vector.shape_cast %18 : vector<4x256xf32> to vector<1x4x256xf32>
    %cst_9 = arith.constant dense<0.000000e+00> : vector<1xf32>
    %20 = vector.multi_reduction <add>, %19, %cst_9 [1, 2] : vector<1x4x256xf32> to vector<1xf32>
    %21 = vector.shape_cast %20 : vector<1xf32> to vector<1x1x1xf32>
    %22 = vector.extract %21[0, 0, 0] : f32 from vector<1x1x1xf32>
    %23 = vector.broadcast %22 : f32 to vector<1x1x1x1xf32>
    %c0_10 = arith.constant 0 : index
    %c0_11 = arith.constant 0 : index
    %c0_12 = arith.constant 0 : index
    %c0_13 = arith.constant 0 : index
    %24 = vector.load %arg5[%c0_10, %c0_11, %c0_12, %c0_13] : memref<1x1x1x1xf32, #tpu.memory_space<vmem>>, vector<1x1x1x1xf32>
    tpu.vector_store %arg5[%c0_10, %c0_11, %c0_12, %c0_13], %23 {strides = array<i32>} : memref<1x1x1x1xf32, #tpu.memory_space<vmem>>, vector<1x1x1x1xf32>,
    return
  }
  func.func @transform_0(%arg0: i32, %arg1: i32) -> (i32, i32, i32) {
    %c0_i32 = arith.constant 0 : i32
    %c0_i32_0 = arith.constant 0 : i32
    return %arg0, %c0_i32, %arg1 : i32, i32, i32
  }
  func.func @transform_1(%arg0: i32, %arg1: i32) -> (i32, i32, i32) {
    %c0_i32 = arith.constant 0 : i32
    %c0_i32_0 = arith.constant 0 : i32
    return %arg0, %c0_i32, %arg1 : i32, i32, i32
  }
  func.func @transform_2(%arg0: i32, %arg1: i32) -> (i32, i32) {
    %c0_i32 = arith.constant 0 : i32
    %c0_i32_0 = arith.constant 0 : i32
    %c0_i32_1 = arith.constant 0 : i32
    return %c0_i32, %c0_i32_0 : i32, i32
  }
  func.func @transform_3(%arg0: i32, %arg1: i32) -> (i32, i32, i32, i32) {
    %c0_i32 = arith.constant 0 : i32
    %c0_i32_0 = arith.constant 0 : i32
    %c0_i32_1 = arith.constant 0 : i32
    return %arg0, %arg1, %c0_i32, %c0_i32_0 : i32, i32, i32, i32
  }
}

</mosaic_0001>

<llo_original>
// kernel: tpu_custom_call.1
$region0: #{tpu_custom_call.1}
  #allocation0 [shape = 'u32[]', space=smem, size = 0x4, offset = 0x4, fixed_abs, tag = 'smem constant byte address 0x4 - core index']
  #allocation1 [shape = 'u32[144,128]{1,0:T(1,128)}', space=vmem, size = 0x12000, scoped, tag = 'internal scratch']
  %s0 = inlined_call_operand.hbm [shape: f32[2,4,256], index: 0, kind: input, shape index: {}]
  %s1 = inlined_call_operand.vmem [shape: s32[2,1,256], index: 1, kind: input, shape index: {}]
  %s2 = inlined_call_operand.vmem [shape: f32[4,1], index: 2, kind: input, shape index: {}]
  %s3 = inlined_call_operand.vmem [shape: f32[2,1,1,1], index: 3, kind: output, shape index: {}]
  %s4 = sld [smem:[#allocation0]]
  $region49: #{tpu_custom_call.1} parent=0
    _
  %s6 = ssub.s32 1, %s4
  %s7 = scalar_select 0, %s6, %s4
  $region1: #{tpu_custom_call.1} parent=0
    #allocation2 [shape = 'u8[8192]{0}', space=vmem, size = 0x2000, scoped, tag = 'input window, operand 0']
    #allocation3 [shape = 's32[2]{0}', space=sflag, size = 0x8, scoped, tag = 'scoped memory for tpu_custom_call.1']
    %8 = vsyncpa [#allocation3], 0
    %s9 = scalar_lea.sflag [#allocation3], 1
    %10 = vsyncpa %s9, 0
    loop: start=0, step=1, limit=4
    $region2: #{tpu_custom_call.1} parent=1 // loop_pre_header
      _
    $region3: #{tpu_custom_call.1} parent=1 // loop_header
      %s12 = sphi 0, %s16
      %p13 = scmp.ge.s32.totalorder %s12, 4
      %s19 = sphi 0, %s31
      %s20 = sphi 0, %s27
      %s21 = sphi 0, %s19
      %s22 = sphi 0, %s20
      %s23 = sphi 0, %s21
      %s24 = sphi 0, %s22
      %s36 = sphi 0, %s38
      %s39 = sphi 0, %s36
      %s40 = sphi 0, %s39
      %s56 = sphi 0, %s40
      %s64 = sphi 0, %s66
      %s67 = sphi 0, %s64
      %s68 = sphi 0, %s67
      %s84 = sphi 0, %s68
      %s88 = sphi 0, %s88
      %s90 = sphi 0, %s88
      %s91 = sphi 0, %s90
      %s105 = sphi 0, %s91
      %s113 = sphi 0, %s115
      %s116 = sphi 0, %s113
      %s117 = sphi 0, %s116
      %s133 = sphi 0, %s117
    $region4: #{tpu_custom_call.1} parent=1 // loop_header_branch
      %15 = sbr.rel (%p13) target = $region8
    $region5: #{tpu_custom_call.1} parent=1 // loop_body
      %s17 = ssub.s32 %s12, 1
      %s18 = ssub.s32 %s12, 2
      %s25 = sadd.s32 1, %s20
      %p26 = scmp.ge.s32.totalorder %s25, 1
      %s27 = scalar_select %p26, 0, %s25
      %s28 = sadd.s32 1, %s19
      %s29 = scalar_select %p26, %s28, %s19
      %p30 = scmp.ge.s32.totalorder %s29, 2
      %s31 = scalar_select %p30, 0, %s29
      %s32 = ssub.s32 %s19, %s31
      %s33 = ssub.s32 %s20, %s27
      %s34 = sor.u32 %s32, %s33
      %p35 = scmp.eq.s32.totalorder %s34, 0
      %s37 = sadd.s32 %s36, 1
      %s38 = scalar_select %p35, %s36, %s37
      %p41 = pneg %p35
      %p42 = scmp.eq.s32.totalorder %s12, 1
      %p43 = por %p41, %p42
      %p44 = scmp.ne.s32.totalorder %s36, %s39
      %p45 = scmp.eq.s32.totalorder %s12, 0
      %p46 = por %p44, %p45
      %p47 = scmp.ne.s32.totalorder %s36, %s39
      %p48 = scmp.eq.s32.totalorder %s17, 1
      %p49 = por %p47, %p48
      %p50 = scmp.ne.s32.totalorder %s39, %s40
      %p51 = scmp.eq.s32.totalorder %s17, 0
      %p52 = por %p50, %p51
      %p53 = scmp.ne.s32.totalorder %s39, %s40
      %p54 = scmp.eq.s32.totalorder %s18, 1
      %p55 = por %p53, %p54
      %p57 = scmp.ne.s32.totalorder %s40, %s56
      %p58 = scmp.eq.s32.totalorder %s18, 0
      %p59 = por %p57, %p58
      %s60 = ssub.s32 %s19, %s31
      %s61 = ssub.s32 %s20, %s27
      %s62 = sor.u32 %s60, %s61
      %p63 = scmp.eq.s32.totalorder %s62, 0
      %s65 = sadd.s32 %s64, 1
      %s66 = scalar_select %p63, %s64, %s65
      %p69 = pneg %p63
      %p70 = scmp.eq.s32.totalorder %s12, 1
      %p71 = por %p69, %p70
      %p72 = scmp.ne.s32.totalorder %s64, %s67
      %p73 = scmp.eq.s32.totalorder %s12, 0
      %p74 = por %p72, %p73
      %p75 = scmp.ne.s32.totalorder %s64, %s67
      %p76 = scmp.eq.s32.totalorder %s17, 1
      %p77 = por %p75, %p76
      %p78 = scmp.ne.s32.totalorder %s67, %s68
      %p79 = scmp.eq.s32.totalorder %s17, 0
      %p80 = por %p78, %p79
      %p81 = scmp.ne.s32.totalorder %s67, %s68
      %p82 = scmp.eq.s32.totalorder %s18, 1
      %p83 = por %p81, %p82
      %p85 = scmp.ne.s32.totalorder %s68, %s84
      %p86 = scmp.eq.s32.totalorder %s18, 0
      %p87 = por %p85, %p86
      %s89 = sadd.s32 %s88, 1
      %p92 = scmp.eq.s32.totalorder %s12, 1
      %p93 = scmp.ne.s32.totalorder %s88, %s90
      %p94 = scmp.eq.s32.totalorder %s12, 0
      %p95 = por %p93, %p94
      %p96 = scmp.ne.s32.totalorder %s88, %s90
      %p97 = scmp.eq.s32.totalorder %s17, 1
      %p98 = por %p96, %p97
      %p99 = scmp.ne.s32.totalorder %s90, %s91
      %p100 = scmp.eq.s32.totalorder %s17, 0
      %p101 = por %p99, %p100
      %p102 = scmp.ne.s32.totalorder %s90, %s91
      %p103 = scmp.eq.s32.totalorder %s18, 1
      %p104 = por %p102, %p103
      %p106 = scmp.ne.s32.totalorder %s91, %s105
      %p107 = scmp.eq.s32.totalorder %s18, 0
      %p108 = por %p106, %p107
      %s109 = ssub.s32 %s19, %s31
      %s110 = ssub.s32 %s20, %s27
      %s111 = sor.u32 %s109, %s110
      %p112 = scmp.eq.s32.totalorder %s111, 0
      %s114 = sadd.s32 %s113, 1
      %s115 = scalar_select %p112, %s113, %s114
      %p118 = pneg %p112
      %p119 = scmp.eq.s32.totalorder %s12, 1
      %p120 = por %p118, %p119
      %p121 = scmp.ne.s32.totalorder %s113, %s116
      %p122 = scmp.eq.s32.totalorder %s12, 0
      %p123 = por %p121, %p122
      %p124 = scmp.ne.s32.totalorder %s113, %s116
      %p125 = scmp.eq.s32.totalorder %s17, 1
      %p126 = por %p124, %p125
      %p127 = scmp.ne.s32.totalorder %s116, %s117
      %p128 = scmp.eq.s32.totalorder %s17, 0
      %p129 = por %p127, %p128
      %p130 = scmp.ne.s32.totalorder %s116, %s117
      %p131 = scmp.eq.s32.totalorder %s18, 1
      %p132 = por %p130, %p131
      %p134 = scmp.ne.s32.totalorder %s117, %s133
      %p135 = scmp.eq.s32.totalorder %s18, 0
      %p136 = por %p134, %p135
      %p137 = scmp.le.s32.totalorder 1, %s12
      %p138 = scmp.lt.s32.totalorder %s12, 3
      %p139 = pnand %p137, %p138
      %p140 = pneg %p139
      // Predicated region
      $region9: #{tpu_custom_call.1} parent=5 // pred_check
        _
      $region10: #{tpu_custom_call.1} parent=5 // pred_check_branch
        %142 = sbr.rel (%p139) target = $region12
      $region11: #{tpu_custom_call.1} parent=5 // pred_region
        %s143 = ssub.s32 %s12, 1
        // Predicated region
        $region13: #{tpu_custom_call.1} parent=11 // pred_check
          %p144 = pneg %p101
        $region14: #{tpu_custom_call.1} parent=11 // pred_check_branch
          %146 = sbr.rel (%p144) target = $region16
        $region15: #{tpu_custom_call.1} parent=11 // pred_region
          _
        $region16: #{tpu_custom_call.1} parent=11 // pred_fallthru
          _
      $region12: #{tpu_custom_call.1} parent=5 // pred_fallthru
        _
      %p147 = scmp.lt.s32.totalorder %s12, 2
      // Predicated region
      $region17: #{tpu_custom_call.1} parent=5 // pred_check
        %p148 = pneg %p147
      $region18: #{tpu_custom_call.1} parent=5 // pred_check_branch
        %150 = sbr.rel (%p148) target = $region20
      $region19: #{tpu_custom_call.1} parent=5 // pred_region
        // Predicated region
        $region21: #{tpu_custom_call.1} parent=19 // pred_check
          %p151 = pneg %p46
        $region22: #{tpu_custom_call.1} parent=19 // pred_check_branch
          %153 = sbr.rel (%p151) target = $region24
        $region23: #{tpu_custom_call.1} parent=19 // pred_region
          %s154 = sand.u32 %s36, 1
          %s155 = scalar_lea.sflag [#allocation3], %s154
          %s156 = sand.u32 %s36, 1
          %s157 = smul.addr %s156, 8
          %s158 = scalar_lea.vmem [#allocation2], %s157
          %s159 = smul.u32 2, %s20
          %s161 = ssub.s32 128, 128
          %162 = vsyncadd %s155, %s161
          %s163 = smul.addr %s19, 2
          %s164 = sadd.s32 %s159, %s163
          %s165 = smul.addr %s164, 64
          %s166 = scalar_lea.hbm %s0, %s165
          %s168 = sshll.u32 %s158, 4
          %s169 = int_to_ptr.vmem [resolvable:$true] %s168
          %171 = dma.hbm_to_vmem [thread:$0]  %s166, 128, %s169, %s155
        $region24: #{tpu_custom_call.1} parent=19 // pred_fallthru
          _
        // Predicated region
        $region25: #{tpu_custom_call.1} parent=19 // pred_check
          %p172 = pneg %p74
        $region26: #{tpu_custom_call.1} parent=19 // pred_check_branch
          %174 = sbr.rel (%p172) target = $region28
        $region27: #{tpu_custom_call.1} parent=19 // pred_region
          %s175 = smul.u32 2, %s20
          %p176 = scmp.lt.s32.totalorder %s19, 1
          %s177 = scalar_select %p176, %s19, 1
          %p178 = scmp.lt.s32.totalorder %s175, 1
          %s179 = scalar_select %p178, %s175, 1
          %s180 = smul.addr %s177, 2
          %s181 = sadd.s32 %s179, %s180
          %s182 = scalar_lea.vmem %s1, %s181
          %s183 = smul.u32 2, %s20
        $region28: #{tpu_custom_call.1} parent=19 // pred_fallthru
          _
      $region20: #{tpu_custom_call.1} parent=5 // pred_fallthru
        _
      %p184 = scmp.le.s32.totalorder 1, %s12
      %p185 = scmp.lt.s32.totalorder %s12, 3
      %p186 = pnand %p184, %p185
      %p187 = pneg %p186
      // Predicated region
      $region29: #{tpu_custom_call.1} parent=5 // pred_check
        _
      $region30: #{tpu_custom_call.1} parent=5 // pred_check_branch
        %189 = sbr.rel (%p186) target = $region32
      $region31: #{tpu_custom_call.1} parent=5 // pred_region
        %s190 = ssub.s32 %s12, 1
        %s191 = sand.u32 %s39, 1
        %s192 = scalar_lea.sflag [#allocation3], %s191
        %s193 = sand.u32 %s39, 1
        %s194 = smul.addr %s193, 8
        %s195 = scalar_lea.vmem [#allocation2], %s194
        // Predicated region
        $region33: #{tpu_custom_call.1} parent=31 // pred_check
          %p196 = pneg %p52
        $region34: #{tpu_custom_call.1} parent=31 // pred_check_branch
          %198 = sbr.rel (%p196) target = $region36
        $region35: #{tpu_custom_call.1} parent=31 // pred_region
          %199 = dma.done %s192, 128
        $region36: #{tpu_custom_call.1} parent=31 // pred_fallthru
          _
        %s200 = sand.u32 %s39, 1
        %s201 = scalar_lea.sflag [#allocation3], %s200
        %s202 = sand.u32 %s39, 1
        %s203 = smul.addr %s202, 8
        %s204 = scalar_lea.vmem [#allocation2], %s203
        %p205 = pneg %p52
        %p206 = pneg %p49
        %s207 = smul.u32 2, %s22
        %p208 = scmp.lt.s32.totalorder %s21, 1
        %s209 = scalar_select %p208, %s21, 1
        %p210 = scmp.lt.s32.totalorder %s207, 1
        %s211 = scalar_select %p210, %s207, 1
        %s212 = smul.addr %s209, 2
        %s213 = sadd.s32 %s211, %s212
        %s214 = scalar_lea.vmem %s1, %s213
        %p215 = pneg %p80
        %p216 = pneg %p77
        %p217 = pneg %p101
        %p218 = pneg %p98
        %p219 = pneg %p129
        %p220 = pneg %p126
        %p221 = scmp.lt.s32.totalorder %s21, 1
        %s222 = scalar_select %p221, %s21, 1
        %p223 = scmp.lt.s32.totalorder %s22, 0
        %s224 = scalar_select %p223, %s22, 0
        %s225 = sadd.s32 %s224, %s222
        %s226 = scalar_lea.vmem %s3, %s225
        %s227 = smul.u32 2, %s22
        %s228 = smul.u32 2, %s22
        %p229 = scmp.lt.s32.totalorder %s21, 1
        %s230 = scalar_select %p229, %s21, 1
        %p231 = scmp.lt.s32.totalorder %s228, 1
        %s232 = scalar_select %p231, %s228, 1
        %s233 = smul.addr %s230, 2
        %s234 = sadd.s32 %s232, %s233
        %s235 = scalar_lea.vmem %s1, %s234
        %s236 = smul.u32 2, %s22
        %p237 = scmp.lt.s32.totalorder %s21, 1
        %s238 = scalar_select %p237, %s21, 1
        %p239 = scmp.lt.s32.totalorder %s22, 0
        %s240 = scalar_select %p239, %s22, 0
        %s241 = sadd.s32 %s240, %s238
        %s242 = scalar_lea.vmem %s3, %s241
        %v243 = vld [vmem:[%s195] sm:$0xff]
        %v244 = vld [vmem:[%s235] sm:$0x3]
        %v245 = vld [vmem:[%s2] sm:$0xf]
        %v246 = vlaneseq
        %v247 = vshrl.u32 %v246, 7
        %v248 = vlaneseq
        %v249 = vshrl.u32 %v248, 7
        %v250 = vsub.s32 0, %v249
        %v251 = vrot.slane %v244, %v250
        %v252 = vlaneseq
        %v253 = vshrl.u32 %v252, 7
        %v254 = vsub.s32 1, %v253
        %v255 = vrot.slane %v244, %v254
        %vm256 = vcmp.eq.s32.totalorder %v247, %v251
        %vm257 = vcmp.eq.s32.totalorder %v247, %v255
        %v258 = vmul.f32 %v243, 1.442695
        %v259 = vpow.pop %v258
        %v260 = vsub.f32 1.0, %v259
        %v261 = vmul.f32 %v260, %v260
        %v262 = vsub.f32 0.0, %v243
        %v263 = vmul.f32 %v262, %v261
        %v265 = vcombine.high %v263, %v263
        %v267 = vsel %vm256, %v263, 0.0
        %v268 = vsel %vm257, %v265, 0.0
        %270 = vset.pattern.permute.xlu0 0
        %271 = vperm.xlu0 %270, %v245
        %v272 = vpop.permute.xlu0 %271
        %v274 = vmul.f32 %v267, %v272
        %v275 = vmul.f32 %v268, %v272
        %vm276 = vcmask 1043456
        %v277 = vsel %vm276, %v274, 0.0
        %v278 = vsel %vm276, %v275, 0.0
        %v279 = vadd.f32 %v277, %v278
        %280 = vadd.xlane.f32.xlu0 %v279
        %v281 = vpop.xlane.xlu0 %280
        %v282 = vrot.slane %v281, 4
        %v283 = vadd.f32 %v281, %v282
        %v284 = vrot.slane %v283, 2
        %v285 = vadd.f32 %v283, %v284
        %v286 = vrot.slane %v285, 1
        %v287 = vadd.f32 %v285, %v286
        %s288 = vtos %v287
        %v289 = vstv %s288
        %vm290 = vcmask 0
        %291 = vst.msk [vmem:[%s242] sm:$0x1] %vm290, %v289
        %p292 = scmp.lt.s32.totalorder %s21, 1
        %s293 = scalar_select %p292, %s21, 1
        %p294 = scmp.lt.s32.totalorder %s22, 0
        %s295 = scalar_select %p294, %s22, 0
        %s296 = sadd.s32 %s295, %s293
        %s297 = scalar_lea.vmem %s3, %s296
        // Predicated region
        $region37: #{tpu_custom_call.1} parent=31 // pred_check
          %p298 = pneg %p126
        $region38: #{tpu_custom_call.1} parent=31 // pred_check_branch
          %300 = sbr.rel (%p298) target = $region40
        $region39: #{tpu_custom_call.1} parent=31 // pred_region
          _
        $region40: #{tpu_custom_call.1} parent=31 // pred_fallthru
          _
      $region32: #{tpu_custom_call.1} parent=5 // pred_fallthru
        _
      %p301 = scmp.le.s32.totalorder 2, %s12
      // Predicated region
      $region41: #{tpu_custom_call.1} parent=5 // pred_check
        %p302 = pneg %p301
      $region42: #{tpu_custom_call.1} parent=5 // pred_check_branch
        %304 = sbr.rel (%p302) target = $region44
      $region43: #{tpu_custom_call.1} parent=5 // pred_region
        %s305 = ssub.s32 %s12, 2
        // Predicated region
        $region45: #{tpu_custom_call.1} parent=43 // pred_check
          %p306 = pneg %p132
        $region46: #{tpu_custom_call.1} parent=43 // pred_check_branch
          %308 = sbr.rel (%p306) target = $region48
        $region47: #{tpu_custom_call.1} parent=43 // pred_region
          %p309 = scmp.lt.s32.totalorder %s23, 1
          %s310 = scalar_select %p309, %s23, 1
          %p311 = scmp.lt.s32.totalorder %s24, 0
          %s312 = scalar_select %p311, %s24, 0
          %s313 = sadd.s32 %s312, %s310
          %s314 = scalar_lea.vmem %s3, %s313
        $region48: #{tpu_custom_call.1} parent=43 // pred_fallthru
          _
      $region44: #{tpu_custom_call.1} parent=5 // pred_fallthru
        _
    $region6: #{tpu_custom_call.1} parent=1 // loop_footer
      %s16 = sadd.s32 1, %s12
    $region7: #{tpu_custom_call.1} parent=1 // loop_footer_branch
      %11 = sbr.rel target = $region3
    $region8: #{tpu_custom_call.1} parent=1 // loop_exit
      _
    %315 = vsyncpa [#allocation3], 1
    %s316 = scalar_lea.sflag [#allocation3], 1
    %317 = vsyncpa %s316, 1

</llo_original>
